<compile_context>
chip_gen: v5e
topology: v5e:2x2
jax: 0.10.0
libtpu: 0.0.40
codegen_flags: <defaults>
</compile_context>

<pallas_src>
import functools
import math

import jax
import jax.numpy as jnp
from jax import lax
from jax.experimental import pallas as pl
from jax.experimental.pallas import tpu as pltpu


def _normalize(x):
    # F.normalize(x, dim=1): x / max(||x||_2, 1e-12)   (rsqrt + multiply)
    ssq = jnp.sum(x * x, axis=1, keepdims=True)
    return x * lax.rsqrt(jnp.maximum(ssq, 1e-24))


def _contrast_kernel(xi_r_ref, xj_r_ref, xi_c_ref, xj_c_ref,
                     li_ref, lj_ref, acc_i_ref, acc_j_ref,
                     *, temperature: float):
    j = pl.program_id(1)
    nj = pl.num_programs(1)
    inv_t = 1.0 / temperature
    self_term = math.exp(inv_t)          # exp(sim[k,k]/T), sim[k,k] == 1

    # Normalize the row / column feature tiles in f32.
    zi_r = _normalize(xi_r_ref[...].astype(jnp.float32))   # (tr, D)
    zj_r = _normalize(xj_r_ref[...].astype(jnp.float32))   # (tr, D)
    zi_c = _normalize(xi_c_ref[...].astype(jnp.float32))   # (tc, D)
    zj_c = _normalize(xj_c_ref[...].astype(jnp.float32))   # (tc, D)

    # Init the per-row denominator accumulators with -exp(1/T): this removes
    # the diagonal (self) term, replacing the (2B,2B) ~eye neg_mask.
    @pl.when(j == 0)
    def _():
        acc_i_ref[...] = jnp.full_like(acc_i_ref, -self_term)
        acc_j_ref[...] = jnp.full_like(acc_j_ref, -self_term)

    # Similarity blocks: contract the feature axis of BOTH operands so no
    # transpose / concat is materialized. f32 accumulation on the MXU.
    dn = (((1,), (1,)), ((), ()))
    s_ii = lax.dot_general(zi_r, zi_c, dn, preferred_element_type=jnp.float32)
    s_ij = lax.dot_general(zi_r, zj_c, dn, preferred_element_type=jnp.float32)
    s_ji = lax.dot_general(zj_r, zi_c, dn, preferred_element_type=jnp.float32)
    s_jj = lax.dot_general(zj_r, zj_c, dn, preferred_element_type=jnp.float32)

    # Online accumulation of rowsum(exp(sim/T)) for both halves of z.
    acc_i_ref[...] += (jnp.sum(jnp.exp(s_ii * inv_t), axis=1, keepdims=True)
                       + jnp.sum(jnp.exp(s_ij * inv_t), axis=1, keepdims=True))
    acc_j_ref[...] += (jnp.sum(jnp.exp(s_ji * inv_t), axis=1, keepdims=True)
                       + jnp.sum(jnp.exp(s_jj * inv_t), axis=1, keepdims=True))

    @pl.when(j == nj - 1)
    def _():
        # pos[k] = sim[k, k+B] = sim[k+B, k] = <z_i[k], z_j[k]>
        pos = jnp.sum(zi_r * zj_r, axis=1, keepdims=True)       # (tr, 1)
        # log-space NT-Xent per row:  -log(exp(pos/T)/denom) = log(denom) - pos/T
        li_ref[...] = jnp.log(acc_i_ref[...]) - pos * inv_t
        lj_ref[...] = jnp.log(acc_j_ref[...]) - pos * inv_t


def _pick_tile(n: int) -> int:
    for t in (512, 256, 128, 64, 32, 16, 8):
        if n % t == 0:
            return t
    return n


def contrast_loss(x_i, x_j, *, temperature: float = 0.5,
                  row_tile=None, col_tile=None):
    """NT-Xent loss matching Contrast.forward. x_i, x_j: (B, D)."""
    B, D = x_i.shape
    tr = row_tile if row_tile is not None else _pick_tile(B)
    tc = col_tile if col_tile is not None else _pick_tile(B)
    assert B % tr == 0 and B % tc == 0, (B, tr, tc)

    kernel = functools.partial(_contrast_kernel, temperature=float(temperature))
    li, lj = pl.pallas_call(
        kernel,
        out_shape=(jax.ShapeDtypeStruct((B, 1), jnp.float32),
                   jax.ShapeDtypeStruct((B, 1), jnp.float32)),
        grid_spec=pltpu.PrefetchScalarGridSpec(
            num_scalar_prefetch=0,
            grid=(B // tr, B // tc),
            in_specs=[
                pl.BlockSpec((tr, D), lambda i, j: (i, 0)),   # x_i row tile
                pl.BlockSpec((tr, D), lambda i, j: (i, 0)),   # x_j row tile
                pl.BlockSpec((tc, D), lambda i, j: (j, 0)),   # x_i col tile
                pl.BlockSpec((tc, D), lambda i, j: (j, 0)),   # x_j col tile
            ],
            out_specs=[
                pl.BlockSpec((tr, 1), lambda i, j: (i, 0)),   # per-row term, half i
                pl.BlockSpec((tr, 1), lambda i, j: (i, 0)),   # per-row term, half j
            ],
            scratch_shapes=[
                pltpu.VMEM((tr, 1), jnp.float32),   # denom accumulator, half i
                pltpu.VMEM((tr, 1), jnp.float32),   # denom accumulator, half j
            ],
        ),
        compiler_params=pltpu.CompilerParams(
            dimension_semantics=("parallel", "arbitrary"),
        ),
    )(x_i, x_j, x_i, x_j)

    # Tiny final reduction over 2B scalars outside the kernel.
    return (jnp.sum(li) + jnp.sum(lj)) / (2.0 * B)


def contrast_loss_ref(x_i, x_j, *, temperature: float = 0.5):
    """Pure-JAX reference mirroring the PyTorch forward."""
    B = x_i.shape[0]
    N = 2 * B

    def l2norm(x):
        n = jnp.sqrt(jnp.sum(x * x, axis=1, keepdims=True))
        return x / jnp.maximum(n, 1e-12)

    z = jnp.concatenate([l2norm(x_i), l2norm(x_j)], axis=0)
    sim = z @ z.T
    idx = jnp.arange(N)
    pos = sim[idx, (idx + B) % N]
    neg_mask = 1.0 - jnp.eye(N, dtype=jnp.float32)
    denom = jnp.sum(neg_mask * jnp.exp(sim / temperature), axis=1)
    nom = jnp.exp(pos / temperature)
    return jnp.sum(-jnp.log(nom / denom)) / (2.0 * B)


if __name__ == "__main__":
    key = jax.random.PRNGKey(0)
    k1, k2, k3, k4 = jax.random.split(key, 4)

    # Small SimCLR projection-head features (single tile path).
    B, D = 4, 128
    x_i = jax.random.normal(k1, (B, D), dtype=jnp.float32)
    x_j = jax.random.normal(k2, (B, D), dtype=jnp.float32)
    loss = jax.block_until_ready(contrast_loss(x_i, x_j, temperature=0.5))
    ref = jax.block_until_ready(contrast_loss_ref(x_i, x_j, temperature=0.5))
    assert jnp.allclose(loss, ref, rtol=1e-4, atol=1e-5), (loss, ref)

    # Exercise the tiled grid (2x2 tiles, online denom accumulation).
    B2, D2 = 16, 128
    y_i = jax.random.normal(k3, (B2, D2), dtype=jnp.float32)
    y_j = jax.random.normal(k4, (B2, D2), dtype=jnp.float32)
    loss2 = jax.block_until_ready(
        contrast_loss(y_i, y_j, temperature=0.5, row_tile=8, col_tile=8))
    ref2 = jax.block_until_ready(contrast_loss_ref(y_i, y_j, temperature=0.5))
    assert jnp.allclose(loss2, ref2, rtol=1e-4, atol=1e-5), (loss2, ref2)

    print("KERNEL_OK")
</pallas_src>

<mosaic_0001>
module attributes {stable_mosaic.version = 11 : i64} {
  func.func @_contrast_kernel(%arg0: i32, %arg1: i32, %arg2: memref<4x128xf32, #tpu.memory_space<vmem>>, %arg3: memref<4x128xf32, #tpu.memory_space<vmem>>, %arg4: memref<4x128xf32, #tpu.memory_space<vmem>>, %arg5: memref<4x128xf32, #tpu.memory_space<vmem>>, %arg6: memref<4x1xf32, #tpu.memory_space<vmem>>, %arg7: memref<4x1xf32, #tpu.memory_space<vmem>>, %arg8: memref<4x1xf32, #tpu.memory_space<vmem>>, %arg9: memref<4x1xf32, #tpu.memory_space<vmem>>) attributes {dimension_semantics = [#tpu.dimension_semantics<parallel>, #tpu.dimension_semantics<arbitrary>], iteration_bounds = array<i64: 1, 1>, scalar_prefetch = 0 : i64, scratch_operands = 2 : i64, tpu.core_type = #tpu.core_type<tc>, window_params = [{transform_indices = @transform_0, window_bounds = array<i64: 4, 128>}, {transform_indices = @transform_1, window_bounds = array<i64: 4, 128>}, {transform_indices = @transform_2, window_bounds = array<i64: 4, 128>}, {transform_indices = @transform_3, window_bounds = array<i64: 4, 128>}, {transform_indices = @transform_4, window_bounds = array<i64: 4, 1>}, {transform_indices = @transform_5, window_bounds = array<i64: 4, 1>}]} {
    %c0 = arith.constant 0 : index
    %c0_0 = arith.constant 0 : index
    %0 = vector.load %arg2[%c0, %c0_0] : memref<4x128xf32, #tpu.memory_space<vmem>>, vector<4x128xf32>
    %1 = arith.mulf %0, %0 : vector<4x128xf32>
    %cst = arith.constant dense<0.000000e+00> : vector<4xf32>
    %2 = vector.multi_reduction <add>, %1, %cst [1] : vector<4x128xf32> to vector<4xf32>
    %3 = vector.shape_cast %2 : vector<4xf32> to vector<4x1xf32>
    %cst_1 = arith.constant 1.000000e-24 : f32
    %4 = vector.broadcast %cst_1 : f32 to vector<4x1xf32>
    %5 = arith.maximumf %3, %4 : vector<4x1xf32>
    %6 = math.rsqrt %5 : vector<4x1xf32>
    %7 = vector.broadcast %6 : vector<4x1xf32> to vector<4x128xf32>
    %8 = arith.mulf %0, %7 : vector<4x128xf32>
    %c0_2 = arith.constant 0 : index
    %c0_3 = arith.constant 0 : index
    %9 = vector.load %arg3[%c0_2, %c0_3] : memref<4x128xf32, #tpu.memory_space<vmem>>, vector<4x128xf32>
    %10 = arith.mulf %9, %9 : vector<4x128xf32>
    %cst_4 = arith.constant dense<0.000000e+00> : vector<4xf32>
    %11 = vector.multi_reduction <add>, %10, %cst_4 [1] : vector<4x128xf32> to vector<4xf32>
    %12 = vector.shape_cast %11 : vector<4xf32> to vector<4x1xf32>
    %cst_5 = arith.constant 1.000000e-24 : f32
    %13 = vector.broadcast %cst_5 : f32 to vector<4x1xf32>
    %14 = arith.maximumf %12, %13 : vector<4x1xf32>
    %15 = math.rsqrt %14 : vector<4x1xf32>
    %16 = vector.broadcast %15 : vector<4x1xf32> to vector<4x128xf32>
    %17 = arith.mulf %9, %16 : vector<4x128xf32>
    %c0_6 = arith.constant 0 : index
    %c0_7 = arith.constant 0 : index
    %18 = vector.load %arg4[%c0_6, %c0_7] : memref<4x128xf32, #tpu.memory_space<vmem>>, vector<4x128xf32>
    %19 = arith.mulf %18, %18 : vector<4x128xf32>
    %cst_8 = arith.constant dense<0.000000e+00> : vector<4xf32>
    %20 = vector.multi_reduction <add>, %19, %cst_8 [1] : vector<4x128xf32> to vector<4xf32>
    %21 = vector.shape_cast %20 : vector<4xf32> to vector<4x1xf32>
    %cst_9 = arith.constant 1.000000e-24 : f32
    %22 = vector.broadcast %cst_9 : f32 to vector<4x1xf32>
    %23 = arith.maximumf %21, %22 : vector<4x1xf32>
    %24 = math.rsqrt %23 : vector<4x1xf32>
    %25 = vector.broadcast %24 : vector<4x1xf32> to vector<4x128xf32>
    %26 = arith.mulf %18, %25 : vector<4x128xf32>
    %c0_10 = arith.constant 0 : index
    %c0_11 = arith.constant 0 : index
    %27 = vector.load %arg5[%c0_10, %c0_11] : memref<4x128xf32, #tpu.memory_space<vmem>>, vector<4x128xf32>
    %28 = arith.mulf %27, %27 : vector<4x128xf32>
    %cst_12 = arith.constant dense<0.000000e+00> : vector<4xf32>
    %29 = vector.multi_reduction <add>, %28, %cst_12 [1] : vector<4x128xf32> to vector<4xf32>
    %30 = vector.shape_cast %29 : vector<4xf32> to vector<4x1xf32>
    %cst_13 = arith.constant 1.000000e-24 : f32
    %31 = vector.broadcast %cst_13 : f32 to vector<4x1xf32>
    %32 = arith.maximumf %30, %31 : vector<4x1xf32>
    %33 = math.rsqrt %32 : vector<4x1xf32>
    %34 = vector.broadcast %33 : vector<4x1xf32> to vector<4x128xf32>
    %35 = arith.mulf %27, %34 : vector<4x128xf32>
    %c0_i32 = arith.constant 0 : i32
    %36 = arith.cmpi eq, %arg1, %c0_i32 : i32
    %37 = arith.extui %36 : i1 to i32
    %c0_i32_14 = arith.constant 0 : i32
    %38 = arith.cmpi ne, %37, %c0_i32_14 : i32
    scf.if %38 {
      %cst_37 = arith.constant -7.3890562 : f32
      %74 = vector.broadcast %cst_37 : f32 to vector<4x1xf32>
      %c0_38 = arith.constant 0 : index
      %c0_39 = arith.constant 0 : index
      %75 = vector.load %arg8[%c0_38, %c0_39] : memref<4x1xf32, #tpu.memory_space<vmem>>, vector<4x1xf32>
      tpu.vector_store %arg8[%c0_38, %c0_39], %74 {strides = array<i32>} : memref<4x1xf32, #tpu.memory_space<vmem>>, vector<4x1xf32>,
      %cst_40 = arith.constant -7.3890562 : f32
      %76 = vector.broadcast %cst_40 : f32 to vector<4x1xf32>
      %c0_41 = arith.constant 0 : index
      %c0_42 = arith.constant 0 : index
      %77 = vector.load %arg9[%c0_41, %c0_42] : memref<4x1xf32, #tpu.memory_space<vmem>>, vector<4x1xf32>
      tpu.vector_store %arg9[%c0_41, %c0_42], %76 {strides = array<i32>} : memref<4x1xf32, #tpu.memory_space<vmem>>, vector<4x1xf32>,
    } else {
    }
    %cst_15 = arith.constant dense<0.000000e+00> : vector<4x4xf32>
    %39 = tpu.matmul %8, %26, %cst_15 {dimension_numbers = #tpu.dot_dimension_numbers<[1], [1], [0], [0], [0, 0, 1, 0], [], []>} : vector<4x128xf32>, vector<4x128xf32>, vector<4x4xf32> -> vector<4x4xf32>
    %cst_16 = arith.constant dense<0.000000e+00> : vector<4x4xf32>
    %40 = tpu.matmul %8, %35, %cst_16 {dimension_numbers = #tpu.dot_dimension_numbers<[1], [1], [0], [0], [0, 0, 1, 0], [], []>} : vector<4x128xf32>, vector<4x128xf32>, vector<4x4xf32> -> vector<4x4xf32>
    %cst_17 = arith.constant dense<0.000000e+00> : vector<4x4xf32>
    %41 = tpu.matmul %17, %26, %cst_17 {dimension_numbers = #tpu.dot_dimension_numbers<[1], [1], [0], [0], [0, 0, 1, 0], [], []>} : vector<4x128xf32>, vector<4x128xf32>, vector<4x4xf32> -> vector<4x4xf32>
    %cst_18 = arith.constant dense<0.000000e+00> : vector<4x4xf32>
    %42 = tpu.matmul %17, %35, %cst_18 {dimension_numbers = #tpu.dot_dimension_numbers<[1], [1], [0], [0], [0, 0, 1, 0], [], []>} : vector<4x128xf32>, vector<4x128xf32>, vector<4x4xf32> -> vector<4x4xf32>
    %c0_19 = arith.constant 0 : index
    %c0_20 = arith.constant 0 : index
    %43 = vector.load %arg8[%c0_19, %c0_20] : memref<4x1xf32, #tpu.memory_space<vmem>>, vector<4x1xf32>
    %cst_21 = arith.constant 2.000000e+00 : f32
    %44 = vector.broadcast %cst_21 : f32 to vector<4x4xf32>
    %45 = arith.mulf %39, %44 : vector<4x4xf32>
    %46 = math.exp %45 : vector<4x4xf32>
    %cst_22 = arith.constant dense<0.000000e+00> : vector<4xf32>
    %47 = vector.multi_reduction <add>, %46, %cst_22 [1] : vector<4x4xf32> to vector<4xf32>
    %48 = vector.shape_cast %47 : vector<4xf32> to vector<4x1xf32>
    %cst_23 = arith.constant 2.000000e+00 : f32
    %49 = vector.broadcast %cst_23 : f32 to vector<4x4xf32>
    %50 = arith.mulf %40, %49 : vector<4x4xf32>
    %51 = math.exp %50 : vector<4x4xf32>
    %cst_24 = arith.constant dense<0.000000e+00> : vector<4xf32>
    %52 = vector.multi_reduction <add>, %51, %cst_24 [1] : vector<4x4xf32> to vector<4xf32>
    %53 = vector.shape_cast %52 : vector<4xf32> to vector<4x1xf32>
    %54 = arith.addf %48, %53 : vector<4x1xf32>
    %55 = arith.addf %43, %54 : vector<4x1xf32>
    %c0_25 = arith.constant 0 : index
    %c0_26 = arith.constant 0 : index
    %56 = vector.load %arg8[%c0_25, %c0_26] : memref<4x1xf32, #tpu.memory_space<vmem>>, vector<4x1xf32>
    tpu.vector_store %arg8[%c0_25, %c0_26], %55 {strides = array<i32>} : memref<4x1xf32, #tpu.memory_space<vmem>>, vector<4x1xf32>,
    %c0_27 = arith.constant 0 : index
    %c0_28 = arith.constant 0 : index
    %57 = vector.load %arg9[%c0_27, %c0_28] : memref<4x1xf32, #tpu.memory_space<vmem>>, vector<4x1xf32>
    %cst_29 = arith.constant 2.000000e+00 : f32
    %58 = vector.broadcast %cst_29 : f32 to vector<4x4xf32>
    %59 = arith.mulf %41, %58 : vector<4x4xf32>
    %60 = math.exp %59 : vector<4x4xf32>
    %cst_30 = arith.constant dense<0.000000e+00> : vector<4xf32>
    %61 = vector.multi_reduction <add>, %60, %cst_30 [1] : vector<4x4xf32> to vector<4xf32>
    %62 = vector.shape_cast %61 : vector<4xf32> to vector<4x1xf32>
    %cst_31 = arith.constant 2.000000e+00 : f32
    %63 = vector.broadcast %cst_31 : f32 to vector<4x4xf32>
    %64 = arith.mulf %42, %63 : vector<4x4xf32>
    %65 = math.exp %64 : vector<4x4xf32>
    %cst_32 = arith.constant dense<0.000000e+00> : vector<4xf32>
    %66 = vector.multi_reduction <add>, %65, %cst_32 [1] : vector<4x4xf32> to vector<4xf32>
    %67 = vector.shape_cast %66 : vector<4xf32> to vector<4x1xf32>
    %68 = arith.addf %62, %67 : vector<4x1xf32>
    %69 = arith.addf %57, %68 : vector<4x1xf32>
    %c0_33 = arith.constant 0 : index
    %c0_34 = arith.constant 0 : index
    %70 = vector.load %arg9[%c0_33, %c0_34] : memref<4x1xf32, #tpu.memory_space<vmem>>, vector<4x1xf32>
    tpu.vector_store %arg9[%c0_33, %c0_34], %69 {strides = array<i32>} : memref<4x1xf32, #tpu.memory_space<vmem>>, vector<4x1xf32>,
    %c0_i32_35 = arith.constant 0 : i32
    %71 = arith.cmpi eq, %arg1, %c0_i32_35 : i32
    %72 = arith.extui %71 : i1 to i32
    %c0_i32_36 = arith.constant 0 : i32
    %73 = arith.cmpi ne, %72, %c0_i32_36 : i32
    scf.if %73 {
      %74 = arith.mulf %8, %17 : vector<4x128xf32>
      %cst_37 = arith.constant dense<0.000000e+00> : vector<4xf32>
      %75 = vector.multi_reduction <add>, %74, %cst_37 [1] : vector<4x128xf32> to vector<4xf32>
      %76 = vector.shape_cast %75 : vector<4xf32> to vector<4x1xf32>
      %c0_38 = arith.constant 0 : index
      %c0_39 = arith.constant 0 : index
      %77 = vector.load %arg8[%c0_38, %c0_39] : memref<4x1xf32, #tpu.memory_space<vmem>>, vector<4x1xf32>
      %78 = math.log %77 : vector<4x1xf32>
      %cst_40 = arith.constant 2.000000e+00 : f32
      %79 = vector.broadcast %cst_40 : f32 to vector<4x1xf32>
      %80 = arith.mulf %76, %79 : vector<4x1xf32>
      %81 = arith.subf %78, %80 : vector<4x1xf32>
      %c0_41 = arith.constant 0 : index
      %c0_42 = arith.constant 0 : index
      %82 = vector.load %arg6[%c0_41, %c0_42] : memref<4x1xf32, #tpu.memory_space<vmem>>, vector<4x1xf32>
      tpu.vector_store %arg6[%c0_41, %c0_42], %81 {strides = array<i32>} : memref<4x1xf32, #tpu.memory_space<vmem>>, vector<4x1xf32>,
      %c0_43 = arith.constant 0 : index
      %c0_44 = arith.constant 0 : index
      %83 = vector.load %arg9[%c0_43, %c0_44] : memref<4x1xf32, #tpu.memory_space<vmem>>, vector<4x1xf32>
      %84 = math.log %83 : vector<4x1xf32>
      %cst_45 = arith.constant 2.000000e+00 : f32
      %85 = vector.broadcast %cst_45 : f32 to vector<4x1xf32>
      %86 = arith.mulf %76, %85 : vector<4x1xf32>
      %87 = arith.subf %84, %86 : vector<4x1xf32>
      %c0_46 = arith.constant 0 : index
      %c0_47 = arith.constant 0 : index
      %88 = vector.load %arg7[%c0_46, %c0_47] : memref<4x1xf32, #tpu.memory_space<vmem>>, vector<4x1xf32>
      tpu.vector_store %arg7[%c0_46, %c0_47], %87 {strides = array<i32>} : memref<4x1xf32, #tpu.memory_space<vmem>>, vector<4x1xf32>,
    } else {
    }
    return
  }
  func.func @transform_0(%arg0: i32, %arg1: i32) -> (i32, i32) {
    %c0_i32 = arith.constant 0 : i32
    %c0_i32_0 = arith.constant 0 : i32
    return %arg0, %c0_i32 : i32, i32
  }
  func.func @transform_1(%arg0: i32, %arg1: i32) -> (i32, i32) {
    %c0_i32 = arith.constant 0 : i32
    %c0_i32_0 = arith.constant 0 : i32
    return %arg0, %c0_i32 : i32, i32
  }
  func.func @transform_2(%arg0: i32, %arg1: i32) -> (i32, i32) {
    %c0_i32 = arith.constant 0 : i32
    %c0_i32_0 = arith.constant 0 : i32
    return %arg1, %c0_i32 : i32, i32
  }
  func.func @transform_3(%arg0: i32, %arg1: i32) -> (i32, i32) {
    %c0_i32 = arith.constant 0 : i32
    %c0_i32_0 = arith.constant 0 : i32
    return %arg1, %c0_i32 : i32, i32
  }
  func.func @transform_4(%arg0: i32, %arg1: i32) -> (i32, i32) {
    %c0_i32 = arith.constant 0 : i32
    %c0_i32_0 = arith.constant 0 : i32
    return %arg0, %c0_i32 : i32, i32
  }
  func.func @transform_5(%arg0: i32, %arg1: i32) -> (i32, i32) {
    %c0_i32 = arith.constant 0 : i32
    %c0_i32_0 = arith.constant 0 : i32
    return %arg0, %c0_i32 : i32, i32
  }
}

</mosaic_0001>

<llo_original>
// kernel: tpu_custom_call.1
$region0: #{tpu_custom_call.1}
  #allocation0 [shape = 'u32[]', space=smem, size = 0x4, offset = 0x4, fixed_abs, tag = 'smem constant byte address 0x4 - core index']
  #allocation1 [shape = 'u32[72,128]{1,0:T(1,128)}', space=vmem, size = 0x9000, scoped, tag = 'internal scratch']
  #allocation2 [shape = 'f32[4,1]{1,0:T(4,128)}', space=vmem, size = 0x800, scoped, tag = 'scratch operand']
  #allocation3 [shape = 'f32[4,1]{1,0:T(4,128)}', space=vmem, size = 0x800, scoped, tag = 'scratch operand']
  %s0 = inlined_call_operand.hbm [shape: f32[4,128], index: 0, kind: input, shape index: {}]
  %s1 = inlined_call_operand.hbm [shape: f32[4,128], index: 1, kind: input, shape index: {}]
  %s2 = inlined_call_operand.hbm [shape: f32[4,128], index: 2, kind: input, shape index: {}]
  %s3 = inlined_call_operand.hbm [shape: f32[4,128], index: 3, kind: input, shape index: {}]
  %s4 = inlined_call_operand.vmem [shape: f32[4,1], index: 4, kind: output, shape index: {0}]
  %s5 = inlined_call_operand.vmem [shape: f32[4,1], index: 5, kind: output, shape index: {1}]
  %6 = xla_tuple %s4, %s5
  %s7 = sld [smem:[#allocation0]]
  $region58: #{tpu_custom_call.1} parent=0
    _
  %s9 = ssub.s32 1, %s7
  %s10 = scalar_select 0, %s9, %s7
  $region1: #{tpu_custom_call.1} parent=0
    #allocation4 [shape = 'u8[2048]{0}', space=vmem, size = 0x800, scoped, tag = 'input window, operand 0, single buffered']
    #allocation5 [shape = 's32[1]{0}', space=sflag, size = 0x4, scoped, tag = 'scoped memory for tpu_custom_call.1']
    #allocation6 [shape = 'u8[2048]{0}', space=vmem, size = 0x800, scoped, tag = 'input window, operand 1, single buffered']
    #allocation7 [shape = 's32[1]{0}', space=sflag, size = 0x4, scoped, tag = 'scoped memory for tpu_custom_call.1']
    #allocation8 [shape = 'u8[2048]{0}', space=vmem, size = 0x800, scoped, tag = 'input window, operand 2, single buffered']
    #allocation9 [shape = 'u8[2048]{0}', space=vmem, size = 0x800, scoped, tag = 'input window, operand 3, single buffered']
    #allocation10 [shape = 's32[1]{0}', space=sflag, size = 0x4, scoped, tag = 'scoped memory for tpu_custom_call.1']
    %11 = vsyncpa [#allocation5], 0
    %12 = vsyncpa [#allocation7], 0
    %13 = vsyncpa [#allocation10], 0
    // Predicated region
    $region2: #{tpu_custom_call.1} parent=1 // pred_check
      _
    $region3: #{tpu_custom_call.1} parent=1 // pred_check_branch
      %15 = sbr.rel (0) target = $region5
    $region4: #{tpu_custom_call.1} parent=1 // pred_region
      %17 = vsyncadd [#allocation5], 0
      %s19 = sshll.u32 %s0, 4
      %s20 = int_to_ptr.hbm [resolvable:$true] %s19
      %s21 = sshll.u32 [#allocation4], 4
      %s22 = int_to_ptr.vmem [resolvable:$true] %s21
      %24 = dma.hbm_to_vmem [thread:$0]  %s20, 64, %s22, [#allocation5]
    $region5: #{tpu_custom_call.1} parent=1 // pred_fallthru
      _
    // Predicated region
    $region6: #{tpu_custom_call.1} parent=1 // pred_check
      _
    $region7: #{tpu_custom_call.1} parent=1 // pred_check_branch
      %26 = sbr.rel (0) target = $region9
    $region8: #{tpu_custom_call.1} parent=1 // pred_region
      %28 = vsyncadd [#allocation7], 0
      %s30 = sshll.u32 %s1, 4
      %s31 = int_to_ptr.hbm [resolvable:$true] %s30
      %s32 = sshll.u32 [#allocation6], 4
      %s33 = int_to_ptr.vmem [resolvable:$true] %s32
      %35 = dma.hbm_to_vmem [thread:$0]  %s31, 64, %s33, [#allocation7]
    $region9: #{tpu_custom_call.1} parent=1 // pred_fallthru
      _
    // Predicated region
    $region10: #{tpu_custom_call.1} parent=1 // pred_check
      _
    $region11: #{tpu_custom_call.1} parent=1 // pred_check_branch
      %37 = sbr.rel (0) target = $region13
    $region12: #{tpu_custom_call.1} parent=1 // pred_region
      %39 = vsyncadd [#allocation7], 0
      %s41 = sshll.u32 %s2, 4
      %s42 = int_to_ptr.hbm [resolvable:$true] %s41
      %s43 = sshll.u32 [#allocation8], 4
      %s44 = int_to_ptr.vmem [resolvable:$true] %s43
      %46 = dma.hbm_to_vmem [thread:$0]  %s42, 64, %s44, [#allocation7]
    $region13: #{tpu_custom_call.1} parent=1 // pred_fallthru
      _
    // Predicated region
    $region14: #{tpu_custom_call.1} parent=1 // pred_check
      _
    $region15: #{tpu_custom_call.1} parent=1 // pred_check_branch
      %48 = sbr.rel (0) target = $region17
    $region16: #{tpu_custom_call.1} parent=1 // pred_region
      %50 = vsyncadd [#allocation10], 0
      %s52 = sshll.u32 %s3, 4
      %s53 = int_to_ptr.hbm [resolvable:$true] %s52
      %s54 = sshll.u32 [#allocation9], 4
      %s55 = int_to_ptr.vmem [resolvable:$true] %s54
      %57 = dma.hbm_to_vmem [thread:$0]  %s53, 64, %s55, [#allocation10]
    $region17: #{tpu_custom_call.1} parent=1 // pred_fallthru
      _
    // Predicated region
    $region18: #{tpu_custom_call.1} parent=1 // pred_check
      _
    $region19: #{tpu_custom_call.1} parent=1 // pred_check_branch
      %59 = sbr.rel (0) target = $region21
    $region20: #{tpu_custom_call.1} parent=1 // pred_region
      %61 = dma.done [#allocation5], 64
    $region21: #{tpu_custom_call.1} parent=1 // pred_fallthru
      _
    // Predicated region
    $region22: #{tpu_custom_call.1} parent=1 // pred_check
      _
    $region23: #{tpu_custom_call.1} parent=1 // pred_check_branch
      %63 = sbr.rel (0) target = $region25
    $region24: #{tpu_custom_call.1} parent=1 // pred_region
      %65 = dma.done [#allocation7], 64
    $region25: #{tpu_custom_call.1} parent=1 // pred_fallthru
      _
    // Predicated region
    $region26: #{tpu_custom_call.1} parent=1 // pred_check
      _
    $region27: #{tpu_custom_call.1} parent=1 // pred_check_branch
      %67 = sbr.rel (0) target = $region29
    $region28: #{tpu_custom_call.1} parent=1 // pred_region
      %69 = dma.done [#allocation7], 64
    $region29: #{tpu_custom_call.1} parent=1 // pred_fallthru
      _
    // Predicated region
    $region30: #{tpu_custom_call.1} parent=1 // pred_check
      _
    $region31: #{tpu_custom_call.1} parent=1 // pred_check_branch
      %71 = sbr.rel (0) target = $region33
    $region32: #{tpu_custom_call.1} parent=1 // pred_region
      %73 = dma.done [#allocation10], 64
    $region33: #{tpu_custom_call.1} parent=1 // pred_fallthru
      _
    %v74 = vld [vmem:[#allocation4] sm:$0xf]
    %v75 = vmul.f32 %v74, %v74
    %vm76 = vcmask 1043456
    %v77 = vsel %vm76, %v75, 0.0
    %78 = vadd.xlane.f32.xlu0 %v77
    %v79 = vpop.xlane.xlu0 %78
    %v80 = vmax.f32 %v79, 1e-24
    %v81 = vrsqrt.pop %v80
    %v82 = vmul.f32 %v81, %v80
    %v83 = vmul.f32 %v82, %v81
    %v84 = vmul.f32 0.5, %v83
    %v85 = vsub.f32 1.5, %v84
    %v86 = vmul.f32 %v81, %v85
    %vm87 = vweird.f32 %v80
    %vm88 = vweird.f32 %v81
    %vm89 = vmor %vm87, %vm88
    %v90 = vsel %vm89, %v81, %v86
    %v91 = vmul.f32 %v74, %v90
    %v92 = vld [vmem:[#allocation6] sm:$0xf]
    %v93 = vmul.f32 %v92, %v92
    %v94 = vsel %vm76, %v93, 0.0
    %95 = vadd.xlane.f32.xlu0 %v94
    %v96 = vpop.xlane.xlu0 %95
    %v97 = vmax.f32 %v96, 1e-24
    %v98 = vrsqrt.pop %v97
    %v99 = vmul.f32 %v98, %v97
    %v100 = vmul.f32 %v99, %v98
    %v101 = vmul.f32 0.5, %v100
    %v102 = vsub.f32 1.5, %v101
    %v103 = vmul.f32 %v98, %v102
    %vm104 = vweird.f32 %v97
    %vm105 = vweird.f32 %v98
    %vm106 = vmor %vm104, %vm105
    %v107 = vsel %vm106, %v98, %v103
    %v108 = vmul.f32 %v92, %v107
    %v109 = vld [vmem:[#allocation8] sm:$0xf]
    %v110 = vmul.f32 %v109, %v109
    %v111 = vsel %vm76, %v110, 0.0
    %112 = vadd.xlane.f32.xlu0 %v111
    %v113 = vpop.xlane.xlu0 %112
    %v114 = vmax.f32 %v113, 1e-24
    %v115 = vrsqrt.pop %v114
    %v116 = vmul.f32 %v115, %v114
    %v117 = vmul.f32 %v116, %v115
    %v118 = vmul.f32 0.5, %v117
    %v119 = vsub.f32 1.5, %v118
    %v120 = vmul.f32 %v115, %v119
    %vm121 = vweird.f32 %v114
    %vm122 = vweird.f32 %v115
    %vm123 = vmor %vm121, %vm122
    %v124 = vsel %vm123, %v115, %v120
    %v125 = vmul.f32 %v109, %v124
    %v126 = vld [vmem:[#allocation9] sm:$0xf]
    %v127 = vmul.f32 %v126, %v126
    %v128 = vsel %vm76, %v127, 0.0
    %129 = vadd.xlane.f32.xlu0 %v128
    %v130 = vpop.xlane.xlu0 %129
    %v131 = vmax.f32 %v130, 1e-24
    %v132 = vrsqrt.pop %v131
    %v133 = vmul.f32 %v132, %v131
    %v134 = vmul.f32 %v133, %v132
    %v135 = vmul.f32 0.5, %v134
    %v136 = vsub.f32 1.5, %v135
    %v137 = vmul.f32 %v132, %v136
    %vm138 = vweird.f32 %v131
    %vm139 = vweird.f32 %v132
    %vm140 = vmor %vm138, %vm139
    %v141 = vsel %vm140, %v132, %v137
    %v142 = vmul.f32 %v126, %v141
    %p143 = scmp.eq.s32.totalorder 0, 0
    // Predicated region
    $region34: #{tpu_custom_call.1} parent=1 // pred_check
      %p144 = pneg %p143
    $region35: #{tpu_custom_call.1} parent=1 // pred_check_branch
      %146 = sbr.rel (%p144) target = $region37
    $region36: #{tpu_custom_call.1} parent=1 // pred_region
      %vm147 = vcmask 3072
      %148 = vst.msk [vmem:[#allocation2] sm:$0xf] %vm147, -7.389056
      %149 = vst.msk [vmem:[#allocation3] sm:$0xf] %vm147, -7.389056
    $region37: #{tpu_custom_call.1} parent=1 // pred_fallthru
      _
    %150 = vmatpush.xpose.msra.mxu0 0.0
    %151 = vmatpush.xpose.msra.mxu0 0.0
    %152 = vmatpush.xpose.msra.mxu0 0.0
    %153 = vmatpush.xpose.msra.mxu0 0.0
    %154 = vmatpush.xpose.msra.mxu0 0.0
    %155 = vmatpush.xpose.msra.mxu0 0.0
    %156 = vmatpush.xpose.msra.mxu0 0.0
    %157 = vmatpush.xpose.msra.mxu0 0.0
    %158 = vmatpush.xpose.msra.mxu0 0.0
    %159 = vmatpush.xpose.msra.mxu0 0.0
    %160 = vmatpush.xpose.msra.mxu0 0.0
    %161 = vmatpush.xpose.msra.mxu0 0.0
    %162 = vmatpush.xpose.msra.mxu0 0.0
    %163 = vmatpush.xpose.msra.mxu0 0.0
    %164 = vmatpush.xpose.msra.mxu0 0.0
    %165 = vmatpush.xpose.msra.mxu0 %v125
    %166 = vmatmul.f32.gmra.mxu0 %v91
    %v167 = vpop.f32.mrf.mxu0
    %v168 = vadd.f32 0.0, %v167
    %169 = vdwg.mxu0
    %170 = vmatpush.xpose.msra.mxu0 0.0
    %171 = vmatpush.xpose.msra.mxu0 0.0
    %172 = vmatpush.xpose.msra.mxu0 0.0
    %173 = vmatpush.xpose.msra.mxu0 0.0
    %174 = vmatpush.xpose.msra.mxu0 0.0
    %175 = vmatpush.xpose.msra.mxu0 0.0
    %176 = vmatpush.xpose.msra.mxu0 0.0
    %177 = vmatpush.xpose.msra.mxu0 0.0
    %178 = vmatpush.xpose.msra.mxu0 0.0
    %179 = vmatpush.xpose.msra.mxu0 0.0
    %180 = vmatpush.xpose.msra.mxu0 0.0
    %181 = vmatpush.xpose.msra.mxu0 0.0
    %182 = vmatpush.xpose.msra.mxu0 0.0
    %183 = vmatpush.xpose.msra.mxu0 0.0
    %184 = vmatpush.xpose.msra.mxu0 0.0
    %185 = vmatpush.xpose.msra.mxu0 %v142
    %186 = vmatmul.f32.gmra.mxu0 %v91
    %v187 = vpop.f32.mrf.mxu0
    %v188 = vadd.f32 0.0, %v187
    %189 = vdwg.mxu0
    %190 = vmatpush.xpose.msra.mxu0 0.0
    %191 = vmatpush.xpose.msra.mxu0 0.0
    %192 = vmatpush.xpose.msra.mxu0 0.0
    %193 = vmatpush.xpose.msra.mxu0 0.0
    %194 = vmatpush.xpose.msra.mxu0 0.0
    %195 = vmatpush.xpose.msra.mxu0 0.0
    %196 = vmatpush.xpose.msra.mxu0 0.0
    %197 = vmatpush.xpose.msra.mxu0 0.0
    %198 = vmatpush.xpose.msra.mxu0 0.0
    %199 = vmatpush.xpose.msra.mxu0 0.0
    %200 = vmatpush.xpose.msra.mxu0 0.0
    %201 = vmatpush.xpose.msra.mxu0 0.0
    %202 = vmatpush.xpose.msra.mxu0 0.0
    %203 = vmatpush.xpose.msra.mxu0 0.0
    %204 = vmatpush.xpose.msra.mxu0 0.0
    %205 = vmatpush.xpose.msra.mxu0 %v125
    %206 = vmatmul.f32.gmra.mxu0 %v108
    %v207 = vpop.f32.mrf.mxu0
    %v208 = vadd.f32 0.0, %v207
    %209 = vdwg.mxu0
    %210 = vmatpush.xpose.msra.mxu0 0.0
    %211 = vmatpush.xpose.msra.mxu0 0.0
    %212 = vmatpush.xpose.msra.mxu0 0.0
    %213 = vmatpush.xpose.msra.mxu0 0.0
    %214 = vmatpush.xpose.msra.mxu0 0.0
    %215 = vmatpush.xpose.msra.mxu0 0.0
    %216 = vmatpush.xpose.msra.mxu0 0.0
    %217 = vmatpush.xpose.msra.mxu0 0.0
    %218 = vmatpush.xpose.msra.mxu0 0.0
    %219 = vmatpush.xpose.msra.mxu0 0.0
    %220 = vmatpush.xpose.msra.mxu0 0.0
    %221 = vmatpush.xpose.msra.mxu0 0.0
    %222 = vmatpush.xpose.msra.mxu0 0.0
    %223 = vmatpush.xpose.msra.mxu0 0.0
    %224 = vmatpush.xpose.msra.mxu0 0.0
    %225 = vmatpush.xpose.msra.mxu0 %v142
    %226 = vmatmul.f32.gmra.mxu0 %v108
    %v227 = vpop.f32.mrf.mxu0
    %v228 = vadd.f32 0.0, %v227
    %229 = vdwg.mxu0
    %v230 = vld [vmem:[#allocation2] sm:$0xf]
    %v231 = vmul.f32 %v168, 2.0
    %v232 = vmul.f32 %v231, 1.442695
    %v233 = vpow.pop %v232
    %vm234 = vcmask 27648
    %v235 = vsel %vm234, %v233, 0.0
    %236 = vadd.xlane.f32.xlu0 %v235
    %v237 = vpop.xlane.xlu0 %236
    %v238 = vmul.f32 %v188, 2.0
    %v239 = vmul.f32 %v238, 1.442695
    %v240 = vpow.pop %v239
    %v241 = vsel %vm234, %v240, 0.0
    %242 = vadd.xlane.f32.xlu0 %v241
    %v243 = vpop.xlane.xlu0 %242
    %v244 = vadd.f32 %v237, %v243
    %v245 = vadd.f32 %v230, %v244
    %vm246 = vcmask 3072
    %247 = vst.msk [vmem:[#allocation2] sm:$0xf] %vm246, %v245
    %v248 = vld [vmem:[#allocation3] sm:$0xf]
    %v249 = vmul.f32 %v208, 2.0
    %v250 = vmul.f32 %v249, 1.442695
    %v251 = vpow.pop %v250
    %v252 = vsel %vm234, %v251, 0.0
    %253 = vadd.xlane.f32.xlu0 %v252
    %v254 = vpop.xlane.xlu0 %253
    %v255 = vmul.f32 %v228, 2.0
    %v256 = vmul.f32 %v255, 1.442695
    %v257 = vpow.pop %v256
    %v258 = vsel %vm234, %v257, 0.0
    %259 = vadd.xlane.f32.xlu0 %v258
    %v260 = vpop.xlane.xlu0 %259
    %v261 = vadd.f32 %v254, %v260
    %v262 = vadd.f32 %v248, %v261
    %263 = vst.msk [vmem:[#allocation3] sm:$0xf] %vm246, %v262
    // Predicated region
    $region38: #{tpu_custom_call.1} parent=1 // pred_check
      %p264 = pneg %p143
    $region39: #{tpu_custom_call.1} parent=1 // pred_check_branch
      %266 = sbr.rel (%p264) target = $region41
    $region40: #{tpu_custom_call.1} parent=1 // pred_region
      %v267 = vmul.f32 %v91, %v108
      %v268 = vsel %vm76, %v267, 0.0
      %269 = vadd.xlane.f32.xlu0 %v268
      %v270 = vpop.xlane.xlu0 %269
      %v271 = vld [vmem:[#allocation2] sm:$0xf]
      %v272 = vlog2.pop %v271
      %v273 = vmul.f32 %v272, 0.6931472
      %v274 = vmul.f32 %v270, 2.0
      %v275 = vsub.f32 %v273, %v274
      %276 = vst.msk [vmem:[%s4] sm:$0xf] %vm246, %v275
      %v277 = vld [vmem:[#allocation3] sm:$0xf]
      %v278 = vlog2.pop %v277
      %v279 = vmul.f32 %v278, 0.6931472
      %v280 = vsub.f32 %v279, %v274
      %281 = vst.msk [vmem:[%s5] sm:$0xf] %vm246, %v280
    $region41: #{tpu_custom_call.1} parent=1 // pred_fallthru
      _
    // Predicated region
    $region42: #{tpu_custom_call.1} parent=1 // pred_check
      _
    $region43: #{tpu_custom_call.1} parent=1 // pred_check_branch
      %283 = sbr.rel (0) target = $region45
    $region44: #{tpu_custom_call.1} parent=1 // pred_region
      _
    $region45: #{tpu_custom_call.1} parent=1 // pred_fallthru
      _
    // Predicated region
    $region46: #{tpu_custom_call.1} parent=1 // pred_check
      _
    $region47: #{tpu_custom_call.1} parent=1 // pred_check_branch
      %285 = sbr.rel (0) target = $region49
    $region48: #{tpu_custom_call.1} parent=1 // pred_region
      _
    $region49: #{tpu_custom_call.1} parent=1 // pred_fallthru
      _
    // Predicated region
    $region50: #{tpu_custom_call.1} parent=1 // pred_check
      _
    $region51: #{tpu_custom_call.1} parent=1 // pred_check_branch
      %287 = sbr.rel (0) target = $region53
    $region52: #{tpu_custom_call.1} parent=1 // pred_region
      _
    $region53: #{tpu_custom_call.1} parent=1 // pred_fallthru
      _
    // Predicated region
    $region54: #{tpu_custom_call.1} parent=1 // pred_check
      _
    $region55: #{tpu_custom_call.1} parent=1 // pred_check_branch
      %289 = sbr.rel (0) target = $region57
    $region56: #{tpu_custom_call.1} parent=1 // pred_region
      _
    $region57: #{tpu_custom_call.1} parent=1 // pred_fallthru
      _
    %290 = vsyncpa [#allocation5], 1
    %291 = vsyncpa [#allocation7], 1
    %292 = vsyncpa [#allocation10], 1

</llo_original>
